<compile_context>
chip_gen: v5e
topology: v5e:2x2
jax: 0.10.0
libtpu: 0.0.40
codegen_flags: <defaults>
</compile_context>

<pallas_src>
import functools

import jax
import jax.numpy as jnp
from jax.experimental import pallas as pl
from jax.experimental.pallas import tpu as pltpu


def _round_up(x, m):
    return (x + m - 1) // m * m


def _pointnet_loss_kernel(pred_ref, target_ref, trans_ref, out_ref, acc_ref, *,
                          label_smoothing, regularization_weight, gamma,
                          batch_size, block_b, steps_per_core):
    pcore = pl.program_id(0)          # parallel (megacore) axis
    i = pl.program_id(1)              # arbitrary (accumulating) axis

    @pl.when(i == 0)
    def _():
        acc_ref[...] = jnp.zeros_like(acc_ref)

    # ---- label-smoothed, focal-modulated cross entropy (VPU/EUP path) -----
    logits = pred_ref[...].astype(jnp.float32)                 # (Bt, K)
    Bt, K = logits.shape
    tgt = target_ref[...]                                      # (Bt, 1) int32

    row = jax.lax.broadcasted_iota(jnp.int32, (Bt, 1), 0)
    g_blk = pcore * steps_per_core + i                         # global block idx
    valid = ((g_blk * block_b + row) < batch_size).astype(jnp.float32)

    m = jnp.max(logits, axis=-1, keepdims=True)
    z = logits - m
    lse = jnp.log(jnp.sum(jnp.exp(z), axis=-1, keepdims=True))
    log_probs = z - lse                                        # (Bt, K)

    cols = jax.lax.broadcasted_iota(jnp.int32, (Bt, K), 1)
    logp_t = jnp.sum(jnp.where(cols == tgt, log_probs, 0.0),
                     axis=-1, keepdims=True)                   # (Bt, 1)
    p_t = jnp.exp(logp_t)                                      # EUP

    # Label smoothing folded analytically; term skipped at trace time when 0.
    if label_smoothing != 0.0:
        ce = (-(1.0 - label_smoothing) * logp_t
              - (label_smoothing / K) * jnp.sum(log_probs, axis=-1, keepdims=True))
    else:
        ce = -logp_t

    one_minus_p = jnp.maximum(1.0 - p_t, 0.0)
    g = float(gamma)
    if g == 0.0:
        focal = jnp.ones_like(one_minus_p)
    elif g.is_integer() and 1 <= int(g) <= 4:
        focal = one_minus_p
        for _ in range(int(g) - 1):
            focal = focal * one_minus_p
    else:
        focal = jnp.power(one_minus_p, g)

    cls_part = jnp.sum(valid * focal * ce)

    # ---- feature-transform orthogonality regularizer (batched MXU) --------
    A = trans_ref[...]                                         # (Bt, D, D)
    D = A.shape[-1]
    A_bf = A.astype(jnp.bfloat16)
    # One batched matmul per step: G_b = A_b @ A_b^T (bf16 in, f32 acc).
    aat = jnp.einsum('bij,bkj->bik', A_bf, A_bf,
                     preferred_element_type=jnp.float32)       # (Bt, D, D)
    # ||A A^T - I||_F^2 = sum(G^2) - 2*trace(A A^T) + D ; trace(A A^T)=sum(A^2)
    gram_sq = jnp.sum(jnp.sum(aat * aat, axis=2), axis=1, keepdims=True)   # (Bt,1)
    a32 = A.astype(jnp.float32)
    tr = jnp.sum(jnp.sum(a32 * a32, axis=2), axis=1, keepdims=True)        # (Bt,1)
    per_b = jnp.maximum(gram_sq - 2.0 * tr + float(D), 0.0)    # clamp before sqrt
    reg_part = jnp.sum(valid * jnp.sqrt(per_b))

    # Single merged accumulator; regularization weight folded per step.
    acc_ref[...] = acc_ref[...] + jnp.reshape(
        cls_part + regularization_weight * reg_part, (1, 1))

    @pl.when(i == pl.num_programs(1) - 1)
    def _():
        # Per-core partial, already divided by the GLOBAL batch size; the
        # wrapper sums the (n_par, 1, 1) partials.
        out_ref[...] = jnp.reshape(acc_ref[...] * (1.0 / batch_size), (1, 1, 1))


def pointnet_classification_loss(pred, target, trans_feat, *,
                                 label_smoothing=0.0,
                                 regularization_weight=0.001,
                                 gamma=1.0,
                                 block_batch=None):
    """Wrapper around the Pallas kernel. Returns a scalar float32 loss."""
    B, K = pred.shape
    D = trans_feat.shape[-1]

    # Only reshape target (and cast if needed); pred / trans_feat go in in
    # their native dtypes (the kernel casts in VMEM).
    tgt = target.reshape(B, 1)
    if tgt.dtype != jnp.int32:
        tgt = tgt.astype(jnp.int32)

    # Batch tile sized against the *lane-padded* trans_feat footprint so one
    # buffer is ~2 MiB (double-buffered ~4 MiB) -> safe on v7x's 64 MiB VMEM,
    # and large enough to amortize the ~0.35 us per-grid-step overhead.
    if block_batch is None:
        itemsize = jnp.dtype(trans_feat.dtype).itemsize
        padded_row_bytes = _round_up(D, 8) * _round_up(D, 128) * itemsize
        bt = (2 * 1024 * 1024) // padded_row_bytes
        bt = max(8, min(256, (bt // 8) * 8))
    else:
        bt = max(8, _round_up(int(block_batch), 8))
    bt = min(bt, _round_up(B, 8))

    steps_total = -(-B // bt)
    n_par = 2 if steps_total >= 2 else 1      # 2-TC split on v7x; no-op on 1-TC chips
    steps_per_core = _round_up(steps_total, n_par) // n_par
    b_padded = n_par * steps_per_core * bt

    if b_padded != B:
        pad = b_padded - B
        pred = jnp.pad(pred, ((0, pad), (0, 0)))
        tgt = jnp.pad(tgt, ((0, pad), (0, 0)))
        trans_feat = jnp.pad(trans_feat, ((0, pad), (0, 0), (0, 0)))

    kernel = functools.partial(
        _pointnet_loss_kernel,
        label_smoothing=float(label_smoothing),
        regularization_weight=float(regularization_weight),
        gamma=float(gamma),
        batch_size=B,
        block_b=bt,
        steps_per_core=steps_per_core,
    )

    partials = pl.pallas_call(
        kernel,
        out_shape=jax.ShapeDtypeStruct((n_par, 1, 1), jnp.float32),
        grid_spec=pltpu.PrefetchScalarGridSpec(
            num_scalar_prefetch=0,
            grid=(n_par, steps_per_core),
            in_specs=[
                pl.BlockSpec((bt, K), lambda p, i: (p * steps_per_core + i, 0)),
                pl.BlockSpec((bt, 1), lambda p, i: (p * steps_per_core + i, 0)),
                pl.BlockSpec((bt, D, D),
                             lambda p, i: (p * steps_per_core + i, 0, 0)),
            ],
            out_specs=pl.BlockSpec((1, 1, 1), lambda p, i: (p, 0, 0)),
            scratch_shapes=[pltpu.VMEM((1, 1), jnp.float32)],
        ),
        compiler_params=pltpu.CompilerParams(
            dimension_semantics=("parallel", "arbitrary"),
            vmem_limit_bytes=32 * 1024 * 1024,
        ),
    )(pred, tgt, trans_feat)
    return jnp.sum(partials)


def _reference_loss(pred, target, trans_feat, label_smoothing,
                    regularization_weight, gamma):
    # Pure-JAX reference for correctness check (canonical, un-folded form).
    B, K = pred.shape
    log_probs = jax.nn.log_softmax(pred.astype(jnp.float32), axis=-1)
    probs = jnp.exp(log_probs)
    onehot = jax.nn.one_hot(target, K, dtype=jnp.float32)
    q = onehot * (1.0 - label_smoothing) + label_smoothing / K
    ce = -jnp.sum(q * log_probs, axis=-1)
    p_t = jnp.sum(onehot * probs, axis=-1)
    cls_loss = jnp.mean(jnp.power(1.0 - p_t, gamma) * ce)
    D = trans_feat.shape[-1]
    tf32 = trans_feat.astype(jnp.float32)
    aat = jnp.einsum('bij,bkj->bik', tf32, tf32)
    diff = aat - jnp.eye(D, dtype=jnp.float32)[None]
    reg = jnp.mean(jnp.sqrt(jnp.sum(diff * diff, axis=(1, 2))))
    return cls_loss + regularization_weight * reg


if __name__ == "__main__":
    # Small shapes consistent with the loss's forward signature:
    #   pred: (B, num_classes) logits, target: (B,) ints, trans_feat: (B, D, D)
    B, K, D = 8, 16, 32
    key = jax.random.PRNGKey(0)
    k1, k2, k3 = jax.random.split(key, 3)
    pred = jax.random.normal(k1, (B, K), dtype=jnp.float32)
    target = jax.random.randint(k2, (B,), 0, K, dtype=jnp.int32)
    trans_feat = (0.1 * jax.random.normal(k3, (B, D, D), dtype=jnp.float32)
                  + jnp.eye(D, dtype=jnp.float32)[None])

    # Defaults + a smoothed / gamma=2 config to exercise the folded-smoothing
    # and focal paths.  Tolerance 1e-3: regularizer matmul is bf16-in/f32-acc
    # on the MXU (scaled by 0.001, so the delta is negligible).
    for ls, rw, g in ((0.0, 0.001, 1.0), (0.1, 0.001, 2.0)):
        loss = pointnet_classification_loss(
            pred, target, trans_feat,
            label_smoothing=ls, regularization_weight=rw, gamma=g)
        loss = jax.block_until_ready(loss)
        ref = _reference_loss(pred, target, trans_feat, ls, rw, g)
        assert jnp.allclose(loss, ref, rtol=1e-3, atol=1e-3), (ls, g, loss, ref)

    # Ragged batch with a forced small tile: exercises the multi-step grid,
    # the 2-way (megacore) split, and the padded-row masking.
    B2 = 20
    k4, k5, k6 = jax.random.split(jax.random.PRNGKey(1), 3)
    pred2 = jax.random.normal(k4, (B2, K), dtype=jnp.float32)
    target2 = jax.random.randint(k5, (B2,), 0, K, dtype=jnp.int32)
    trans2 = (0.1 * jax.random.normal(k6, (B2, D, D), dtype=jnp.float32)
              + jnp.eye(D, dtype=jnp.float32)[None])
    loss2 = pointnet_classification_loss(
        pred2, target2, trans2,
        label_smoothing=0.0, regularization_weight=0.001, gamma=1.0,
        block_batch=8)
    loss2 = jax.block_until_ready(loss2)
    ref2 = _reference_loss(pred2, target2, trans2, 0.0, 0.001, 1.0)
    assert jnp.allclose(loss2, ref2, rtol=1e-3, atol=1e-3), (loss2, ref2)

    print("KERNEL_OK")
</pallas_src>

<mosaic_0001>
module attributes {stable_mosaic.version = 11 : i64} {
  func.func @_pointnet_loss_kernel(%arg0: i32, %arg1: i32, %arg2: memref<8x16xf32, #tpu.memory_space<vmem>>, %arg3: memref<8x1xi32, #tpu.memory_space<vmem>>, %arg4: memref<8x32x32xf32, #tpu.memory_space<vmem>>, %arg5: memref<1x1x1xf32, #tpu.memory_space<vmem>>, %arg6: memref<1x1xf32, #tpu.memory_space<vmem>>) attributes {dimension_semantics = [#tpu.dimension_semantics<parallel>, #tpu.dimension_semantics<arbitrary>], iteration_bounds = array<i64: 1, 1>, scalar_prefetch = 0 : i64, scratch_operands = 1 : i64, tpu.core_type = #tpu.core_type<tc>, window_params = [{transform_indices = @transform_0, window_bounds = array<i64: 8, 16>}, {transform_indices = @transform_1, window_bounds = array<i64: 8, 1>}, {transform_indices = @transform_2, window_bounds = array<i64: 8, 32, 32>}, {transform_indices = @transform_3, window_bounds = array<i64: 1, 1, 1>}]} {
    %c0_i32 = arith.constant 0 : i32
    %0 = arith.cmpi eq, %arg1, %c0_i32 : i32
    %1 = arith.extui %0 : i1 to i32
    %c0_i32_0 = arith.constant 0 : i32
    %2 = arith.cmpi ne, %1, %c0_i32_0 : i32
    scf.if %2 {
      %cst_31 = arith.constant 0.000000e+00 : f32
      %78 = vector.broadcast %cst_31 : f32 to vector<1x1xf32>
      %c0_32 = arith.constant 0 : index
      %c0_33 = arith.constant 0 : index
      %79 = vector.load %arg6[%c0_32, %c0_33] : memref<1x1xf32, #tpu.memory_space<vmem>>, vector<1x1xf32>
      tpu.vector_store %arg6[%c0_32, %c0_33], %78 {strides = array<i32>} : memref<1x1xf32, #tpu.memory_space<vmem>>, vector<1x1xf32>,
    } else {
    }
    %c0 = arith.constant 0 : index
    %c0_1 = arith.constant 0 : index
    %3 = vector.load %arg2[%c0, %c0_1] : memref<8x16xf32, #tpu.memory_space<vmem>>, vector<8x16xf32>
    %c0_2 = arith.constant 0 : index
    %c0_3 = arith.constant 0 : index
    %4 = vector.load %arg3[%c0_2, %c0_3] : memref<8x1xi32, #tpu.memory_space<vmem>>, vector<8x1xi32>
    %5 = tpu.iota {dimensions = array<i32: 0>} : vector<8x1xi32>
    %c1_i32 = arith.constant 1 : i32
    %6 = arith.muli %arg0, %c1_i32 : i32
    %7 = arith.addi %6, %arg1 : i32
    %c8_i32 = arith.constant 8 : i32
    %8 = arith.muli %7, %c8_i32 : i32
    %9 = vector.broadcast %8 : i32 to vector<8x1xi32>
    %10 = arith.addi %9, %5 : vector<8x1xi32>
    %c8_i32_4 = arith.constant 8 : i32
    %11 = vector.broadcast %c8_i32_4 : i32 to vector<8x1xi32>
    %12 = arith.cmpi slt, %10, %11 : vector<8x1xi32>
    %13 = arith.extui %12 : vector<8x1xi1> to vector<8x1xi32>
    %14 = arith.sitofp %13 : vector<8x1xi32> to vector<8x1xf32>
    %cst = arith.constant dense<0xFF800000> : vector<8xf32>
    %15 = vector.multi_reduction <maximumf>, %3, %cst [1] : vector<8x16xf32> to vector<8xf32>
    %16 = vector.shape_cast %15 : vector<8xf32> to vector<8x1xf32>
    %17 = vector.broadcast %16 : vector<8x1xf32> to vector<8x16xf32>
    %18 = arith.subf %3, %17 : vector<8x16xf32>
    %19 = math.exp %18 : vector<8x16xf32>
    %cst_5 = arith.constant dense<0.000000e+00> : vector<8xf32>
    %20 = vector.multi_reduction <add>, %19, %cst_5 [1] : vector<8x16xf32> to vector<8xf32>
    %21 = vector.shape_cast %20 : vector<8xf32> to vector<8x1xf32>
    %22 = math.log %21 : vector<8x1xf32>
    %23 = vector.broadcast %22 : vector<8x1xf32> to vector<8x16xf32>
    %24 = arith.subf %18, %23 : vector<8x16xf32>
    %25 = tpu.iota {dimensions = array<i32: 1>} : vector<8x16xi32>
    %26 = vector.broadcast %4 : vector<8x1xi32> to vector<8x16xi32>
    %27 = arith.cmpi eq, %25, %26 : vector<8x16xi32>
    %cst_6 = arith.constant 0.000000e+00 : f32
    %28 = vector.broadcast %cst_6 : f32 to vector<8x16xf32>
    %29 = arith.select %27, %24, %28 : vector<8x16xi1>, vector<8x16xf32>
    %cst_7 = arith.constant dense<0.000000e+00> : vector<8xf32>
    %30 = vector.multi_reduction <add>, %29, %cst_7 [1] : vector<8x16xf32> to vector<8xf32>
    %31 = vector.shape_cast %30 : vector<8xf32> to vector<8x1xf32>
    %32 = math.exp %31 : vector<8x1xf32>
    %cst_8 = arith.constant 0.000000e+00 : f32
    %33 = vector.broadcast %cst_8 : f32 to vector<8x1xf32>
    %34 = arith.subf %33, %31 : vector<8x1xf32>
    %cst_9 = arith.constant 1.000000e+00 : f32
    %35 = vector.broadcast %cst_9 : f32 to vector<8x1xf32>
    %36 = arith.subf %35, %32 : vector<8x1xf32>
    %cst_10 = arith.constant 0.000000e+00 : f32
    %37 = vector.broadcast %cst_10 : f32 to vector<8x1xf32>
    %38 = arith.maximumf %36, %37 : vector<8x1xf32>
    %39 = arith.mulf %14, %38 : vector<8x1xf32>
    %40 = arith.mulf %39, %34 : vector<8x1xf32>
    %41 = vector.shape_cast %40 : vector<8x1xf32> to vector<1x8x1xf32>
    %cst_11 = arith.constant dense<0.000000e+00> : vector<1xf32>
    %42 = vector.multi_reduction <add>, %41, %cst_11 [1, 2] : vector<1x8x1xf32> to vector<1xf32>
    %43 = vector.shape_cast %42 : vector<1xf32> to vector<1x1x1xf32>
    %44 = vector.extract %43[0, 0, 0] : f32 from vector<1x1x1xf32>
    %c0_12 = arith.constant 0 : index
    %c0_13 = arith.constant 0 : index
    %c0_14 = arith.constant 0 : index
    %45 = vector.load %arg4[%c0_12, %c0_13, %c0_14] : memref<8x32x32xf32, #tpu.memory_space<vmem>>, vector<8x32x32xf32>
    %46 = arith.truncf %45 : vector<8x32x32xf32> to vector<8x32x32xbf16>
    "tpu.trace_start"() <{level = 10 : i32, message = "bij,bkj->bik"}> : () -> ()
    %cst_15 = arith.constant dense<0.000000e+00> : vector<8x32x32xf32>
    %47 = tpu.matmul %46, %46, %cst_15 {dimension_numbers = #tpu.dot_dimension_numbers<[2], [2], [1], [1], [0, 0, 0, 1, 1, 1], [0], [0]>} : vector<8x32x32xbf16>, vector<8x32x32xbf16>, vector<8x32x32xf32> -> vector<8x32x32xf32>
    "tpu.trace_stop"() : () -> ()
    %48 = arith.mulf %47, %47 : vector<8x32x32xf32>
    %cst_16 = arith.constant dense<0.000000e+00> : vector<8x32xf32>
    %49 = vector.multi_reduction <add>, %48, %cst_16 [2] : vector<8x32x32xf32> to vector<8x32xf32>
    %cst_17 = arith.constant dense<0.000000e+00> : vector<8xf32>
    %50 = vector.multi_reduction <add>, %49, %cst_17 [1] : vector<8x32xf32> to vector<8xf32>
    %51 = vector.shape_cast %50 : vector<8xf32> to vector<8x1xf32>
    %52 = arith.mulf %45, %45 : vector<8x32x32xf32>
    %cst_18 = arith.constant dense<0.000000e+00> : vector<8x32xf32>
    %53 = vector.multi_reduction <add>, %52, %cst_18 [2] : vector<8x32x32xf32> to vector<8x32xf32>
    %cst_19 = arith.constant dense<0.000000e+00> : vector<8xf32>
    %54 = vector.multi_reduction <add>, %53, %cst_19 [1] : vector<8x32xf32> to vector<8xf32>
    %55 = vector.shape_cast %54 : vector<8xf32> to vector<8x1xf32>
    %cst_20 = arith.constant 2.000000e+00 : f32
    %56 = vector.broadcast %cst_20 : f32 to vector<8x1xf32>
    %57 = arith.mulf %56, %55 : vector<8x1xf32>
    %58 = arith.subf %51, %57 : vector<8x1xf32>
    %cst_21 = arith.constant 3.200000e+01 : f32
    %59 = vector.broadcast %cst_21 : f32 to vector<8x1xf32>
    %60 = arith.addf %58, %59 : vector<8x1xf32>
    %cst_22 = arith.constant 0.000000e+00 : f32
    %61 = vector.broadcast %cst_22 : f32 to vector<8x1xf32>
    %62 = arith.maximumf %60, %61 : vector<8x1xf32>
    %63 = math.sqrt %62 : vector<8x1xf32>
    %64 = arith.mulf %14, %63 : vector<8x1xf32>
    %65 = vector.shape_cast %64 : vector<8x1xf32> to vector<1x8x1xf32>
    %cst_23 = arith.constant dense<0.000000e+00> : vector<1xf32>
    %66 = vector.multi_reduction <add>, %65, %cst_23 [1, 2] : vector<1x8x1xf32> to vector<1xf32>
    %67 = vector.shape_cast %66 : vector<1xf32> to vector<1x1x1xf32>
    %68 = vector.extract %67[0, 0, 0] : f32 from vector<1x1x1xf32>
    %c0_24 = arith.constant 0 : index
    %c0_25 = arith.constant 0 : index
    %69 = vector.load %arg6[%c0_24, %c0_25] : memref<1x1xf32, #tpu.memory_space<vmem>>, vector<1x1xf32>
    %cst_26 = arith.constant 1.000000e-03 : f32
    %70 = arith.mulf %cst_26, %68 : f32
    %71 = arith.addf %44, %70 : f32
    %72 = vector.broadcast %71 : f32 to vector<1x1xf32>
    %73 = arith.addf %69, %72 : vector<1x1xf32>
    %c0_27 = arith.constant 0 : index
    %c0_28 = arith.constant 0 : index
    %74 = vector.load %arg6[%c0_27, %c0_28] : memref<1x1xf32, #tpu.memory_space<vmem>>, vector<1x1xf32>
    tpu.vector_store %arg6[%c0_27, %c0_28], %73 {strides = array<i32>} : memref<1x1xf32, #tpu.memory_space<vmem>>, vector<1x1xf32>,
    %c0_i32_29 = arith.constant 0 : i32
    %75 = arith.cmpi eq, %arg1, %c0_i32_29 : i32
    %76 = arith.extui %75 : i1 to i32
    %c0_i32_30 = arith.constant 0 : i32
    %77 = arith.cmpi ne, %76, %c0_i32_30 : i32
    scf.if %77 {
      %c0_31 = arith.constant 0 : index
      %c0_32 = arith.constant 0 : index
      %78 = vector.load %arg6[%c0_31, %c0_32] : memref<1x1xf32, #tpu.memory_space<vmem>>, vector<1x1xf32>
      %cst_33 = arith.constant 1.250000e-01 : f32
      %79 = vector.broadcast %cst_33 : f32 to vector<1x1xf32>
      %80 = arith.mulf %78, %79 : vector<1x1xf32>
      %81 = vector.shape_cast %80 : vector<1x1xf32> to vector<1x1x1xf32>
      %c0_34 = arith.constant 0 : index
      %c0_35 = arith.constant 0 : index
      %c0_36 = arith.constant 0 : index
      %82 = vector.load %arg5[%c0_34, %c0_35, %c0_36] : memref<1x1x1xf32, #tpu.memory_space<vmem>>, vector<1x1x1xf32>
      tpu.vector_store %arg5[%c0_34, %c0_35, %c0_36], %81 {strides = array<i32>} : memref<1x1x1xf32, #tpu.memory_space<vmem>>, vector<1x1x1xf32>,
    } else {
    }
    return
  }
  func.func @transform_0(%arg0: i32, %arg1: i32) -> (i32, i32) {
    %c1_i32 = arith.constant 1 : i32
    %0 = arith.muli %arg0, %c1_i32 : i32
    %1 = arith.addi %0, %arg1 : i32
    %c0_i32 = arith.constant 0 : i32
    %c0_i32_0 = arith.constant 0 : i32
    return %1, %c0_i32 : i32, i32
  }
  func.func @transform_1(%arg0: i32, %arg1: i32) -> (i32, i32) {
    %c1_i32 = arith.constant 1 : i32
    %0 = arith.muli %arg0, %c1_i32 : i32
    %1 = arith.addi %0, %arg1 : i32
    %c0_i32 = arith.constant 0 : i32
    %c0_i32_0 = arith.constant 0 : i32
    return %1, %c0_i32 : i32, i32
  }
  func.func @transform_2(%arg0: i32, %arg1: i32) -> (i32, i32, i32) {
    %c1_i32 = arith.constant 1 : i32
    %0 = arith.muli %arg0, %c1_i32 : i32
    %1 = arith.addi %0, %arg1 : i32
    %c0_i32 = arith.constant 0 : i32
    %c0_i32_0 = arith.constant 0 : i32
    %c0_i32_1 = arith.constant 0 : i32
    return %1, %c0_i32, %c0_i32_0 : i32, i32, i32
  }
  func.func @transform_3(%arg0: i32, %arg1: i32) -> (i32, i32, i32) {
    %c0_i32 = arith.constant 0 : i32
    %c0_i32_0 = arith.constant 0 : i32
    %c0_i32_1 = arith.constant 0 : i32
    return %arg0, %c0_i32, %c0_i32_0 : i32, i32, i32
  }
}

</mosaic_0001>

<llo_original>
// kernel: tpu_custom_call.1
$region0: #{tpu_custom_call.1}
  #allocation0 [shape = 'u32[]', space=smem, size = 0x4, offset = 0x4, fixed_abs, tag = 'smem constant byte address 0x4 - core index']
  #allocation1 [shape = 'u32[72,128]{1,0:T(1,128)}', space=vmem, size = 0x9000, scoped, tag = 'internal scratch']
  #allocation2 [shape = 'f32[1,1]{1,0:T(1,128)}', space=vmem, size = 0x200, scoped, tag = 'scratch operand']
  %s0 = inlined_call_operand.vmem [shape: f32[8,16], index: 0, kind: input, shape index: {}]
  %s1 = inlined_call_operand.vmem [shape: s32[8,1], index: 1, kind: input, shape index: {}]
  %s2 = inlined_call_operand.hbm [shape: f32[8,32,32], index: 2, kind: input, shape index: {}]
  %s3 = inlined_call_operand.hbm [shape: f32[1,1,1], index: 3, kind: output, shape index: {}]
  %s4 = sld [smem:[#allocation0]]
  $region34: #{tpu_custom_call.1} parent=0
    _
  %s6 = ssub.s32 1, %s4
  %s7 = scalar_select 0, %s6, %s4
  $region1: #{tpu_custom_call.1} parent=0
    #allocation3 [shape = 'u8[131072]{0}', space=vmem, size = 0x20000, scoped, tag = 'input window, operand 2, single buffered']
    #allocation4 [shape = 's32[1]{0}', space=sflag, size = 0x4, scoped, tag = 'scoped memory for tpu_custom_call.1']
    #allocation5 [shape = 's32[1]{0}', space=sflag, size = 0x4, scoped, tag = 'scoped memory for tpu_custom_call.1']
    #allocation6 [shape = 'u8[512]{0}', space=vmem, size = 0x400, scoped, tag = 'output window, operand 0, single buffered']
    %8 = vsyncpa [#allocation4], 0
    %9 = vsyncpa [#allocation5], 0
    // Predicated region
    $region2: #{tpu_custom_call.1} parent=1 // pred_check
      _
    $region3: #{tpu_custom_call.1} parent=1 // pred_check_branch
      %11 = sbr.rel (0) target = $region5
    $region4: #{tpu_custom_call.1} parent=1 // pred_region
      %s12 = sadd.s32 0, 0
      %p13 = scmp.lt.s32.totalorder %s12, 0
      %s14 = scalar_select %p13, %s12, 0
      %s15 = smul.addr %s14, 8
      %s16 = scalar_lea.vmem %s0, %s15
      %s17 = sadd.s32 0, 0
    $region5: #{tpu_custom_call.1} parent=1 // pred_fallthru
      _
    // Predicated region
    $region6: #{tpu_custom_call.1} parent=1 // pred_check
      _
    $region7: #{tpu_custom_call.1} parent=1 // pred_check_branch
      %19 = sbr.rel (0) target = $region9
    $region8: #{tpu_custom_call.1} parent=1 // pred_region
      %s20 = sadd.s32 0, 0
      %p21 = scmp.lt.s32.totalorder %s20, 0
      %s22 = scalar_select %p21, %s20, 0
      %s23 = smul.addr %s22, 8
      %s24 = scalar_lea.vmem %s1, %s23
      %s25 = sadd.s32 0, 0
    $region9: #{tpu_custom_call.1} parent=1 // pred_fallthru
      _
    // Predicated region
    $region10: #{tpu_custom_call.1} parent=1 // pred_check
      _
    $region11: #{tpu_custom_call.1} parent=1 // pred_check_branch
      %27 = sbr.rel (0) target = $region13
    $region12: #{tpu_custom_call.1} parent=1 // pred_region
      %s28 = sadd.s32 0, 0
      %s29 = smul.u32 8, %s28
      %31 = vsyncadd [#allocation4], 0
      %s32 = smul.addr %s29, 4
      %s33 = smul.addr %s32, 8
      %s34 = scalar_lea.hbm %s2, %s33
      %s35 = sshll.u32 %s34, 4
      %s36 = int_to_ptr.hbm [resolvable:$true] %s35
      %s37 = sshll.u32 [#allocation3], 4
      %s38 = int_to_ptr.vmem [resolvable:$true] %s37
      %43 = dma.hbm_to_vmem [thread:$0]  %s36, 4096, %s38, [#allocation4], 128, 128, 8
    $region13: #{tpu_custom_call.1} parent=1 // pred_fallthru
      _
    // Predicated region
    $region14: #{tpu_custom_call.1} parent=1 // pred_check
      _
    $region15: #{tpu_custom_call.1} parent=1 // pred_check_branch
      %45 = sbr.rel (0) target = $region17
    $region16: #{tpu_custom_call.1} parent=1 // pred_region
      %47 = dma.done [#allocation4], 4096
    $region17: #{tpu_custom_call.1} parent=1 // pred_fallthru
      _
    %s48 = sadd.s32 0, 0
    %p49 = scmp.lt.s32.totalorder %s48, 0
    %s50 = scalar_select %p49, %s48, 0
    %s51 = smul.addr %s50, 8
    %s52 = scalar_lea.vmem %s0, %s51
    %s53 = sadd.s32 0, 0
    %p54 = scmp.lt.s32.totalorder %s53, 0
    %s55 = scalar_select %p54, %s53, 0
    %s56 = smul.addr %s55, 8
    %s57 = scalar_lea.vmem %s1, %s56
    %s58 = sadd.s32 0, 0
    %p59 = scmp.lt.s32.totalorder %s58, 0
    %s60 = scalar_select %p59, %s58, 0
    %s61 = smul.addr %s60, 8
    %s62 = scalar_lea.vmem %s0, %s61
    %s63 = sadd.s32 0, 0
    %s64 = sadd.s32 0, 0
    %p65 = scmp.lt.s32.totalorder %s64, 0
    %s66 = scalar_select %p65, %s64, 0
    %s67 = smul.addr %s66, 8
    %s68 = scalar_lea.vmem %s1, %s67
    %s69 = sadd.s32 0, 0
    %s70 = sadd.s32 0, 0
    %s71 = smul.u32 8, %s70
    %p73 = scmp.eq.s32.totalorder 0, 0
    // Predicated region
    $region18: #{tpu_custom_call.1} parent=1 // pred_check
      %p74 = pneg %p73
    $region19: #{tpu_custom_call.1} parent=1 // pred_check_branch
      %76 = sbr.rel (%p74) target = $region21
    $region20: #{tpu_custom_call.1} parent=1 // pred_region
      %vm77 = vcmask 0
      %78 = vst.msk [vmem:[#allocation2] sm:$0x1] %vm77, 0.0
    $region21: #{tpu_custom_call.1} parent=1 // pred_fallthru
      _
    %v79 = vld [vmem:[%s62] sm:$0xff]
    %v80 = vld [vmem:[%s68] sm:$0xff]
    %v81 = vlaneseq
    %v82 = vshrl.u32 %v81, 7
    %s83 = sadd.s32 0, 0
    %s84 = smul.u32 %s83, 8
    %v85 = vstv %s84
    %v86 = vadd.s32 %v85, %v82
    %vm87 = vcmp.lt.s32.totalorder %v86, 8
    %v88 = vsel %vm87, 1, 0
    %v89 = vcvt.s32.f32 %v88
    %vm90 = vcmask 130048
    %v91 = vsel %vm90, %v79, -inf
    %92 = vmax.xlane.f32.xlu0 %v91
    %v93 = vpop.xlane.xlu0 %92
    %v94 = vsub.f32 %v79, %v93
    %v95 = vmul.f32 %v94, 1.442695
    %v96 = vpow.pop %v95
    %v97 = vsel %vm90, %v96, 0.0
    %98 = vadd.xlane.f32.xlu0 %v97
    %v99 = vpop.xlane.xlu0 %98
    %v100 = vlog2.pop %v99
    %v101 = vmul.f32 %v100, 0.6931472
    %v102 = vsub.f32 %v94, %v101
    %v103 = vlaneseq
    %v104 = vand.u32 %v103, 127
    %105 = vset.pattern.permute.xlu0 0
    %106 = vperm.xlu0 %105, %v80
    %v107 = vpop.permute.xlu0 %106
    %vm108 = vcmp.eq.s32.totalorder %v104, %v107
    %v109 = vsel %vm108, %v102, 0.0
    %v110 = vsel %vm90, %v109, 0.0
    %111 = vadd.xlane.f32.xlu0 %v110
    %v112 = vpop.xlane.xlu0 %111
    %v113 = vmul.f32 %v112, 1.442695
    %v114 = vpow.pop %v113
    %v115 = vsub.f32 0.0, %v112
    %v116 = vsub.f32 1.0, %v114
    %v117 = vmax.f32 %v116, 0.0
    %v118 = vmul.f32 %v89, %v117
    %v119 = vmul.f32 %v118, %v115
    %vm120 = vcmask 7168
    %v121 = vsel %vm120, %v119, 0.0
    %122 = vadd.xlane.f32.xlu0 %v121
    %v123 = vpop.xlane.xlu0 %122
    %v124 = vrot.slane %v123, 4
    %v125 = vadd.f32 %v123, %v124
    %v126 = vrot.slane %v125, 2
    %v127 = vadd.f32 %v125, %v126
    %v128 = vrot.slane %v127, 1
    %v129 = vadd.f32 %v127, %v128
    %s130 = vtos %v129
    %v131 = vld [vmem:[#allocation3] sm:$0xff]
    %v132 = vld [vmem:[#allocation3 + $0x8] sm:$0xff]
    %v133 = vld [vmem:[#allocation3 + $0x10] sm:$0xff]
    %v134 = vld [vmem:[#allocation3 + $0x18] sm:$0xff]
    %v135 = vld [vmem:[#allocation3 + $0x20] sm:$0xff]
    %v136 = vld [vmem:[#allocation3 + $0x28] sm:$0xff]
    %v137 = vld [vmem:[#allocation3 + $0x30] sm:$0xff]
    %v138 = vld [vmem:[#allocation3 + $0x38] sm:$0xff]
    %v139 = vld [vmem:[#allocation3 + $0x40] sm:$0xff]
    %v140 = vld [vmem:[#allocation3 + $0x48] sm:$0xff]
    %v141 = vld [vmem:[#allocation3 + $0x50] sm:$0xff]
    %v142 = vld [vmem:[#allocation3 + $0x58] sm:$0xff]
    %v143 = vld [vmem:[#allocation3 + $0x60] sm:$0xff]
    %v144 = vld [vmem:[#allocation3 + $0x68] sm:$0xff]
    %v145 = vld [vmem:[#allocation3 + $0x70] sm:$0xff]
    %v146 = vld [vmem:[#allocation3 + $0x78] sm:$0xff]
    %v147 = vld [vmem:[#allocation3 + $0x80] sm:$0xff]
    %v148 = vld [vmem:[#allocation3 + $0x88] sm:$0xff]
    %v149 = vld [vmem:[#allocation3 + $0x90] sm:$0xff]
    %v150 = vld [vmem:[#allocation3 + $0x98] sm:$0xff]
    %v151 = vld [vmem:[#allocation3 + $0xa0] sm:$0xff]
    %v152 = vld [vmem:[#allocation3 + $0xa8] sm:$0xff]
    %v153 = vld [vmem:[#allocation3 + $0xb0] sm:$0xff]
    %v154 = vld [vmem:[#allocation3 + $0xb8] sm:$0xff]
    %v155 = vld [vmem:[#allocation3 + $0xc0] sm:$0xff]
    %v156 = vld [vmem:[#allocation3 + $0xc8] sm:$0xff]
    %v157 = vld [vmem:[#allocation3 + $0xd0] sm:$0xff]
    %v158 = vld [vmem:[#allocation3 + $0xd8] sm:$0xff]
    %v159 = vld [vmem:[#allocation3 + $0xe0] sm:$0xff]
    %v160 = vld [vmem:[#allocation3 + $0xe8] sm:$0xff]
    %v161 = vld [vmem:[#allocation3 + $0xf0] sm:$0xff]
    %v162 = vld [vmem:[#allocation3 + $0xf8] sm:$0xff]
    %v163 = vpack.c.bf16 %v131, %v131
    %v164 = vpack.c.bf16 %v132, %v132
    %v165 = vpack.c.bf16 %v133, %v133
    %v166 = vpack.c.bf16 %v134, %v134
    %v167 = vpack.c.bf16 %v135, %v135
    %v168 = vpack.c.bf16 %v136, %v136
    %v169 = vpack.c.bf16 %v137, %v137
    %v170 = vpack.c.bf16 %v138, %v138
    %v171 = vpack.c.bf16 %v139, %v139
    %v172 = vpack.c.bf16 %v140, %v140
    %v173 = vpack.c.bf16 %v141, %v141
    %v174 = vpack.c.bf16 %v142, %v142
    %v175 = vpack.c.bf16 %v143, %v143
    %v176 = vpack.c.bf16 %v144, %v144
    %v177 = vpack.c.bf16 %v145, %v145
    %v178 = vpack.c.bf16 %v146, %v146
    %v179 = vpack.c.bf16 %v147, %v147
    %v180 = vpack.c.bf16 %v148, %v148
    %v181 = vpack.c.bf16 %v149, %v149
    %v182 = vpack.c.bf16 %v150, %v150
    %v183 = vpack.c.bf16 %v151, %v151
    %v184 = vpack.c.bf16 %v152, %v152
    %v185 = vpack.c.bf16 %v153, %v153
    %v186 = vpack.c.bf16 %v154, %v154
    %v187 = vpack.c.bf16 %v155, %v155
    %v188 = vpack.c.bf16 %v156, %v156
    %v189 = vpack.c.bf16 %v157, %v157
    %v190 = vpack.c.bf16 %v158, %v158
    %v191 = vpack.c.bf16 %v159, %v159
    %v192 = vpack.c.bf16 %v160, %v160
    %v193 = vpack.c.bf16 %v161, %v161
    %v194 = vpack.c.bf16 %v162, %v162
    %v199 = vunpack.c.l.b16 %v163
    %v200 = vunpack.c.l.b16 %v164
    %v201 = vunpack.c.l.b16 %v165
    %v202 = vunpack.c.l.b16 %v166
    %v203 = vpack.c.b16 %v200, %v199
    %v204 = vpack.c.b16 %v202, %v201
    %vm205 = vcmask 261120
    %v207 = vsel %vm205, %v203, 0
    %v210 = vsel %vm205, %v204, 0
    %212 = vmatpush.bf16.xpose.msra.mxu0 0
    %213 = vmatpush.bf16.xpose.msra.mxu0 0
    %214 = vmatpush.bf16.xpose.msra.mxu0 0
    %215 = vmatpush.bf16.xpose.msra.mxu0 0
    %216 = vmatpush.bf16.xpose.msra.mxu0 0
    %217 = vmatpush.bf16.xpose.msra.mxu0 0
    %218 = vmatpush.bf16.xpose.msra.mxu0 %v210
    %219 = vmatpush.bf16.xpose.msra.mxu0 %v207
    %220 = vmatmul.bf16.gmra.mxu0 %v207
    %v221 = vpop.f32.mrf.mxu0
    %v222 = vadd.f32 0.0, %v221
    %v223 = vpop.f32.mrf.mxu0
    %v224 = vadd.f32 0.0, %v223
    %225 = vmatmul.bf16.gmra.mxu0 %v210
    %v226 = vpop.f32.mrf.mxu0
    %v227 = vadd.f32 0.0, %v226
    %v228 = vpop.f32.mrf.mxu0
    %v229 = vadd.f32 0.0, %v228
    %230 = vdwg.mxu0
    %v235 = vunpack.c.l.b16 %v167
    %v236 = vunpack.c.l.b16 %v168
    %v237 = vunpack.c.l.b16 %v169
    %v238 = vunpack.c.l.b16 %v170
    %v239 = vpack.c.b16 %v236, %v235
    %v240 = vpack.c.b16 %v238, %v237
    %v242 = vsel %vm205, %v239, 0
    %v245 = vsel %vm205, %v240, 0
    %247 = vmatpush.bf16.xpose.msra.mxu0 0
    %248 = vmatpush.bf16.xpose.msra.mxu0 0
    %249 = vmatpush.bf16.xpose.msra.mxu0 0
    %250 = vmatpush.bf16.xpose.msra.mxu0 0
    %251 = vmatpush.bf16.xpose.msra.mxu0 0
    %252 = vmatpush.bf16.xpose.msra.mxu0 0
    %253 = vmatpush.bf16.xpose.msra.mxu0 %v245
    %254 = vmatpush.bf16.xpose.msra.mxu0 %v242
    %255 = vmatmul.bf16.gmra.mxu0 %v242
    %v256 = vpop.f32.mrf.mxu0
    %v257 = vadd.f32 0.0, %v256
    %v258 = vpop.f32.mrf.mxu0
    %v259 = vadd.f32 0.0, %v258
    %260 = vmatmul.bf16.gmra.mxu0 %v245
    %v261 = vpop.f32.mrf.mxu0
    %v262 = vadd.f32 0.0, %v261
    %v263 = vpop.f32.mrf.mxu0
    %v264 = vadd.f32 0.0, %v263
    %265 = vdwg.mxu0
    %v270 = vunpack.c.l.b16 %v171
    %v271 = vunpack.c.l.b16 %v172
    %v272 = vunpack.c.l.b16 %v173
    %v273 = vunpack.c.l.b16 %v174
    %v274 = vpack.c.b16 %v271, %v270
    %v275 = vpack.c.b16 %v273, %v272
    %v277 = vsel %vm205, %v274, 0
    %v280 = vsel %vm205, %v275, 0
    %282 = vmatpush.bf16.xpose.msra.mxu0 0
    %283 = vmatpush.bf16.xpose.msra.mxu0 0
    %284 = vmatpush.bf16.xpose.msra.mxu0 0
    %285 = vmatpush.bf16.xpose.msra.mxu0 0
    %286 = vmatpush.bf16.xpose.msra.mxu0 0
    %287 = vmatpush.bf16.xpose.msra.mxu0 0
    %288 = vmatpush.bf16.xpose.msra.mxu0 %v280
    %289 = vmatpush.bf16.xpose.msra.mxu0 %v277
    %290 = vmatmul.bf16.gmra.mxu0 %v277
    %v291 = vpop.f32.mrf.mxu0
    %v292 = vadd.f32 0.0, %v291
    %v293 = vpop.f32.mrf.mxu0
    %v294 = vadd.f32 0.0, %v293
    %295 = vmatmul.bf16.gmra.mxu0 %v280
    %v296 = vpop.f32.mrf.mxu0
    %v297 = vadd.f32 0.0, %v296
    %v298 = vpop.f32.mrf.mxu0
    %v299 = vadd.f32 0.0, %v298
    %300 = vdwg.mxu0
    %v305 = vunpack.c.l.b16 %v175
    %v306 = vunpack.c.l.b16 %v176
    %v307 = vunpack.c.l.b16 %v177
    %v308 = vunpack.c.l.b16 %v178
    %v309 = vpack.c.b16 %v306, %v305
    %v310 = vpack.c.b16 %v308, %v307
    %v312 = vsel %vm205, %v309, 0
    %v315 = vsel %vm205, %v310, 0
    %317 = vmatpush.bf16.xpose.msra.mxu0 0
    %318 = vmatpush.bf16.xpose.msra.mxu0 0
    %319 = vmatpush.bf16.xpose.msra.mxu0 0
    %320 = vmatpush.bf16.xpose.msra.mxu0 0
    %321 = vmatpush.bf16.xpose.msra.mxu0 0
    %322 = vmatpush.bf16.xpose.msra.mxu0 0
    %323 = vmatpush.bf16.xpose.msra.mxu0 %v315
    %324 = vmatpush.bf16.xpose.msra.mxu0 %v312
    %325 = vmatmul.bf16.gmra.mxu0 %v312
    %v326 = vpop.f32.mrf.mxu0
    %v327 = vadd.f32 0.0, %v326
    %v328 = vpop.f32.mrf.mxu0
    %v329 = vadd.f32 0.0, %v328
    %330 = vmatmul.bf16.gmra.mxu0 %v315
    %v331 = vpop.f32.mrf.mxu0
    %v332 = vadd.f32 0.0, %v331
    %v333 = vpop.f32.mrf.mxu0
    %v334 = vadd.f32 0.0, %v333
    %335 = vdwg.mxu0
    %v340 = vunpack.c.l.b16 %v179
    %v341 = vunpack.c.l.b16 %v180
    %v342 = vunpack.c.l.b16 %v181
    %v343 = vunpack.c.l.b16 %v182
    %v344 = vpack.c.b16 %v341, %v340
    %v345 = vpack.c.b16 %v343, %v342
    %v347 = vsel %vm205, %v344, 0
    %v350 = vsel %vm205, %v345, 0
    %352 = vmatpush.bf16.xpose.msra.mxu0 0
    %353 = vmatpush.bf16.xpose.msra.mxu0 0
    %354 = vmatpush.bf16.xpose.msra.mxu0 0
    %355 = vmatpush.bf16.xpose.msra.mxu0 0
    %356 = vmatpush.bf16.xpose.msra.mxu0 0
    %357 = vmatpush.bf16.xpose.msra.mxu0 0
    %358 = vmatpush.bf16.xpose.msra.mxu0 %v350
    %359 = vmatpush.bf16.xpose.msra.mxu0 %v347
    %360 = vmatmul.bf16.gmra.mxu0 %v347
    %v361 = vpop.f32.mrf.mxu0
    %v362 = vadd.f32 0.0, %v361
    %v363 = vpop.f32.mrf.mxu0
    %v364 = vadd.f32 0.0, %v363
    %365 = vmatmul.bf16.gmra.mxu0 %v350
    %v366 = vpop.f32.mrf.mxu0
    %v367 = vadd.f32 0.0, %v366
    %v368 = vpop.f32.mrf.mxu0
    %v369 = vadd.f32 0.0, %v368
    %370 = vdwg.mxu0
    %v375 = vunpack.c.l.b16 %v183
    %v376 = vunpack.c.l.b16 %v184
    %v377 = vunpack.c.l.b16 %v185
    %v378 = vunpack.c.l.b16 %v186
    %v379 = vpack.c.b16 %v376, %v375
    %v380 = vpack.c.b16 %v378, %v377
    %v382 = vsel %vm205, %v379, 0
    %v385 = vsel %vm205, %v380, 0
    %387 = vmatpush.bf16.xpose.msra.mxu0 0
    %388 = vmatpush.bf16.xpose.msra.mxu0 0
    %389 = vmatpush.bf16.xpose.msra.mxu0 0
    %390 = vmatpush.bf16.xpose.msra.mxu0 0
    %391 = vmatpush.bf16.xpose.msra.mxu0 0
    %392 = vmatpush.bf16.xpose.msra.mxu0 0
    %393 = vmatpush.bf16.xpose.msra.mxu0 %v385
    %394 = vmatpush.bf16.xpose.msra.mxu0 %v382
    %395 = vmatmul.bf16.gmra.mxu0 %v382
    %v396 = vpop.f32.mrf.mxu0
    %v397 = vadd.f32 0.0, %v396
    %v398 = vpop.f32.mrf.mxu0
    %v399 = vadd.f32 0.0, %v398
    %400 = vmatmul.bf16.gmra.mxu0 %v385
    %v401 = vpop.f32.mrf.mxu0
    %v402 = vadd.f32 0.0, %v401
    %v403 = vpop.f32.mrf.mxu0
    %v404 = vadd.f32 0.0, %v403
    %405 = vdwg.mxu0
    %v410 = vunpack.c.l.b16 %v187
    %v411 = vunpack.c.l.b16 %v188
    %v412 = vunpack.c.l.b16 %v189
    %v413 = vunpack.c.l.b16 %v190
    %v414 = vpack.c.b16 %v411, %v410
    %v415 = vpack.c.b16 %v413, %v412
    %v417 = vsel %vm205, %v414, 0
    %v420 = vsel %vm205, %v415, 0
    %422 = vmatpush.bf16.xpose.msra.mxu0 0
    %423 = vmatpush.bf16.xpose.msra.mxu0 0
    %424 = vmatpush.bf16.xpose.msra.mxu0 0
    %425 = vmatpush.bf16.xpose.msra.mxu0 0
    %426 = vmatpush.bf16.xpose.msra.mxu0 0
    %427 = vmatpush.bf16.xpose.msra.mxu0 0
    %428 = vmatpush.bf16.xpose.msra.mxu0 %v420
    %429 = vmatpush.bf16.xpose.msra.mxu0 %v417
    %430 = vmatmul.bf16.gmra.mxu0 %v417
    %v431 = vpop.f32.mrf.mxu0
    %v432 = vadd.f32 0.0, %v431
    %v433 = vpop.f32.mrf.mxu0
    %v434 = vadd.f32 0.0, %v433
    %435 = vmatmul.bf16.gmra.mxu0 %v420
    %v436 = vpop.f32.mrf.mxu0
    %v437 = vadd.f32 0.0, %v436
    %v438 = vpop.f32.mrf.mxu0
    %v439 = vadd.f32 0.0, %v438
    %440 = vdwg.mxu0
    %v445 = vunpack.c.l.b16 %v191
    %v446 = vunpack.c.l.b16 %v192
    %v447 = vunpack.c.l.b16 %v193
    %v448 = vunpack.c.l.b16 %v194
    %v449 = vpack.c.b16 %v446, %v445
    %v450 = vpack.c.b16 %v448, %v447
    %v452 = vsel %vm205, %v449, 0
    %v455 = vsel %vm205, %v450, 0
    %457 = vmatpush.bf16.xpose.msra.mxu0 0
    %458 = vmatpush.bf16.xpose.msra.mxu0 0
    %459 = vmatpush.bf16.xpose.msra.mxu0 0
    %460 = vmatpush.bf16.xpose.msra.mxu0 0
    %461 = vmatpush.bf16.xpose.msra.mxu0 0
    %462 = vmatpush.bf16.xpose.msra.mxu0 0
    %463 = vmatpush.bf16.xpose.msra.mxu0 %v455
    %464 = vmatpush.bf16.xpose.msra.mxu0 %v452
    %465 = vmatmul.bf16.gmra.mxu0 %v452
    %v466 = vpop.f32.mrf.mxu0
    %v467 = vadd.f32 0.0, %v466
    %v468 = vpop.f32.mrf.mxu0
    %v469 = vadd.f32 0.0, %v468
    %470 = vmatmul.bf16.gmra.mxu0 %v455
    %v471 = vpop.f32.mrf.mxu0
    %v472 = vadd.f32 0.0, %v471
    %v473 = vpop.f32.mrf.mxu0
    %v474 = vadd.f32 0.0, %v473
    %475 = vdwg.mxu0
    %v476 = vmul.f32 %v222, %v222
    %v477 = vmul.f32 %v224, %v224
    %v478 = vmul.f32 %v227, %v227
    %v479 = vmul.f32 %v229, %v229
    %v480 = vmul.f32 %v257, %v257
    %v481 = vmul.f32 %v259, %v259
    %v482 = vmul.f32 %v262, %v262
    %v483 = vmul.f32 %v264, %v264
    %v484 = vmul.f32 %v292, %v292
    %v485 = vmul.f32 %v294, %v294
    %v486 = vmul.f32 %v297, %v297
    %v487 = vmul.f32 %v299, %v299
    %v488 = vmul.f32 %v327, %v327
    %v489 = vmul.f32 %v329, %v329
    %v490 = vmul.f32 %v332, %v332
    %v491 = vmul.f32 %v334, %v334
    %v492 = vmul.f32 %v362, %v362
    %v493 = vmul.f32 %v364, %v364
    %v494 = vmul.f32 %v367, %v367
    %v495 = vmul.f32 %v369, %v369
    %v496 = vmul.f32 %v397, %v397
    %v497 = vmul.f32 %v399, %v399
    %v498 = vmul.f32 %v402, %v402
    %v499 = vmul.f32 %v404, %v404
    %v500 = vmul.f32 %v432, %v432
    %v501 = vmul.f32 %v434, %v434
    %v502 = vmul.f32 %v437, %v437
    %v503 = vmul.f32 %v439, %v439
    %v504 = vmul.f32 %v467, %v467
    %v505 = vmul.f32 %v469, %v469
    %v506 = vmul.f32 %v472, %v472
    %v507 = vmul.f32 %v474, %v474
    %v508 = vsel %vm205, %v476, 0.0
    %509 = vadd.xlane.f32.xlu0 %v508
    %v510 = vpop.xlane.xlu0 %509
    %v511 = vsel %vm205, %v477, 0.0
    %512 = vadd.xlane.f32.xlu0 %v511
    %v513 = vpop.xlane.xlu0 %512
    %v514 = vsel %vm205, %v478, 0.0
    %515 = vadd.xlane.f32.xlu0 %v514
    %v516 = vpop.xlane.xlu0 %515
    %v517 = vsel %vm205, %v479, 0.0
    %518 = vadd.xlane.f32.xlu0 %v517
    %v519 = vpop.xlane.xlu0 %518
    %v520 = vsel %vm205, %v480, 0.0
    %521 = vadd.xlane.f32.xlu0 %v520
    %v522 = vpop.xlane.xlu0 %521
    %v523 = vsel %vm205, %v481, 0.0
    %524 = vadd.xlane.f32.xlu0 %v523
    %v525 = vpop.xlane.xlu0 %524
    %v526 = vsel %vm205, %v482, 0.0
    %527 = vadd.xlane.f32.xlu0 %v526
    %v528 = vpop.xlane.xlu0 %527
    %v529 = vsel %vm205, %v483, 0.0
    %530 = vadd.xlane.f32.xlu0 %v529
    %v531 = vpop.xlane.xlu0 %530
    %v532 = vsel %vm205, %v484, 0.0
    %533 = vadd.xlane.f32.xlu0 %v532
    %v534 = vpop.xlane.xlu0 %533
    %v535 = vsel %vm205, %v485, 0.0
    %536 = vadd.xlane.f32.xlu0 %v535
    %v537 = vpop.xlane.xlu0 %536
    %v538 = vsel %vm205, %v486, 0.0
    %539 = vadd.xlane.f32.xlu0 %v538
    %v540 = vpop.xlane.xlu0 %539
    %v541 = vsel %vm205, %v487, 0.0
    %542 = vadd.xlane.f32.xlu0 %v541
    %v543 = vpop.xlane.xlu0 %542
    %v544 = vsel %vm205, %v488, 0.0
    %545 = vadd.xlane.f32.xlu0 %v544
    %v546 = vpop.xlane.xlu0 %545
    %v547 = vsel %vm205, %v489, 0.0
    %548 = vadd.xlane.f32.xlu0 %v547
    %v549 = vpop.xlane.xlu0 %548
    %v550 = vsel %vm205, %v490, 0.0
    %551 = vadd.xlane.f32.xlu0 %v550
    %v552 = vpop.xlane.xlu0 %551
    %v553 = vsel %vm205, %v491, 0.0
    %554 = vadd.xlane.f32.xlu0 %v553
    %v555 = vpop.xlane.xlu0 %554
    %v556 = vsel %vm205, %v492, 0.0
    %557 = vadd.xlane.f32.xlu0 %v556
    %v558 = vpop.xlane.xlu0 %557
    %v559 = vsel %vm205, %v493, 0.0
    %560 = vadd.xlane.f32.xlu0 %v559
    %v561 = vpop.xlane.xlu0 %560
    %v562 = vsel %vm205, %v494, 0.0
    %563 = vadd.xlane.f32.xlu0 %v562
    %v564 = vpop.xlane.xlu0 %563
    %v565 = vsel %vm205, %v495, 0.0
    %566 = vadd.xlane.f32.xlu0 %v565
    %v567 = vpop.xlane.xlu0 %566
    %v568 = vsel %vm205, %v496, 0.0
    %569 = vadd.xlane.f32.xlu0 %v568
    %v570 = vpop.xlane.xlu0 %569
    %v571 = vsel %vm205, %v497, 0.0
    %572 = vadd.xlane.f32.xlu0 %v571
    %v573 = vpop.xlane.xlu0 %572
    %v574 = vsel %vm205, %v498, 0.0
    %575 = vadd.xlane.f32.xlu0 %v574
    %v576 = vpop.xlane.xlu0 %575
    %v577 = vsel %vm205, %v499, 0.0
    %578 = vadd.xlane.f32.xlu0 %v577
    %v579 = vpop.xlane.xlu0 %578
    %v580 = vsel %vm205, %v500, 0.0
    %581 = vadd.xlane.f32.xlu0 %v580
    %v582 = vpop.xlane.xlu0 %581
    %v583 = vsel %vm205, %v501, 0.0
    %584 = vadd.xlane.f32.xlu0 %v583
    %v585 = vpop.xlane.xlu0 %584
    %v586 = vsel %vm205, %v502, 0.0
    %587 = vadd.xlane.f32.xlu0 %v586
    %v588 = vpop.xlane.xlu0 %587
    %v589 = vsel %vm205, %v503, 0.0
    %590 = vadd.xlane.f32.xlu0 %v589
    %v591 = vpop.xlane.xlu0 %590
    %v592 = vsel %vm205, %v504, 0.0
    %593 = vadd.xlane.f32.xlu0 %v592
    %v594 = vpop.xlane.xlu0 %593
    %v595 = vsel %vm205, %v505, 0.0
    %596 = vadd.xlane.f32.xlu0 %v595
    %v597 = vpop.xlane.xlu0 %596
    %v598 = vsel %vm205, %v506, 0.0
    %599 = vadd.xlane.f32.xlu0 %v598
    %v600 = vpop.xlane.xlu0 %599
    %v601 = vsel %vm205, %v507, 0.0
    %602 = vadd.xlane.f32.xlu0 %v601
    %v603 = vpop.xlane.xlu0 %602
    %v636 = vperm.slane %v510, %v104
    %v637 = vadd.s32 %v104, 4294967288
    %v638 = vperm.slane %v513, %v637
    %vm639 = vcmask 130112
    %v640 = vsel %vm639, %v638, %v636
    %v641 = vadd.s32 %v104, 4294967280
    %v642 = vperm.slane %v516, %v641
    %vm643 = vcmask 195712
    %v644 = vsel %vm643, %v642, %v640
    %v645 = vadd.s32 %v104, 4294967272
    %v646 = vperm.slane %v519, %v645
    %vm647 = vcmask 261312
    %v648 = vsel %vm647, %v646, %v644
    %v649 = vperm.slane %v522, %v104
    %v650 = vperm.slane %v525, %v637
    %v651 = vsel %vm639, %v650, %v649
    %v652 = vperm.slane %v528, %v641
    %v653 = vsel %vm643, %v652, %v651
    %v654 = vperm.slane %v531, %v645
    %v655 = vsel %vm647, %v654, %v653
    %v656 = vperm.slane %v534, %v104
    %v657 = vperm.slane %v537, %v637
    %v658 = vsel %vm639, %v657, %v656
    %v659 = vperm.slane %v540, %v641
    %v660 = vsel %vm643, %v659, %v658
    %v661 = vperm.slane %v543, %v645
    %v662 = vsel %vm647, %v661, %v660
    %v663 = vperm.slane %v546, %v104
    %v664 = vperm.slane %v549, %v637
    %v665 = vsel %vm639, %v664, %v663
    %v666 = vperm.slane %v552, %v641
    %v667 = vsel %vm643, %v666, %v665
    %v668 = vperm.slane %v555, %v645
    %v669 = vsel %vm647, %v668, %v667
    %v670 = vperm.slane %v558, %v104
    %v671 = vperm.slane %v561, %v637
    %v672 = vsel %vm639, %v671, %v670
    %v673 = vperm.slane %v564, %v641
    %v674 = vsel %vm643, %v673, %v672
    %v675 = vperm.slane %v567, %v645
    %v676 = vsel %vm647, %v675, %v674
    %v677 = vperm.slane %v570, %v104
    %v678 = vperm.slane %v573, %v637
    %v679 = vsel %vm639, %v678, %v677
    %v680 = vperm.slane %v576, %v641
    %v681 = vsel %vm643, %v680, %v679
    %v682 = vperm.slane %v579, %v645
    %v683 = vsel %vm647, %v682, %v681
    %v684 = vperm.slane %v582, %v104
    %v685 = vperm.slane %v585, %v637
    %v686 = vsel %vm639, %v685, %v684
    %v687 = vperm.slane %v588, %v641
    %v688 = vsel %vm643, %v687, %v686
    %v689 = vperm.slane %v591, %v645
    %v690 = vsel %vm647, %v689, %v688
    %v691 = vperm.slane %v594, %v104
    %v692 = vperm.slane %v597, %v637
    %v693 = vsel %vm639, %v692, %v691
    %v694 = vperm.slane %v600, %v641
    %v695 = vsel %vm643, %v694, %v693
    %v696 = vperm.slane %v603, %v645
    %v697 = vsel %vm647, %v696, %v695
    %vm698 = vcmask 1041409
    %v699 = vsel %vm698, %v655, %v648
    %vm700 = vcmask 1042434
    %v701 = vsel %vm700, %v662, %v699
    %vm702 = vcmask 1043459
    %v703 = vsel %vm702, %v669, %v701
    %vm704 = vcmask 1044484
    %v705 = vsel %vm704, %v676, %v703
    %vm706 = vcmask 1045509
    %v707 = vsel %vm706, %v683, %v705
    %vm708 = vcmask 1046534
    %v709 = vsel %vm708, %v690, %v707
    %vm710 = vcmask 1047559
    %v711 = vsel %vm710, %v697, %v709
    %v713 = vsel %vm205, %v711, 0.0
    %714 = vadd.xlane.f32.xlu0 %v713
    %v715 = vpop.xlane.xlu0 %714
    %v716 = vmul.f32 %v131, %v131
    %v717 = vmul.f32 %v132, %v132
    %v718 = vmul.f32 %v133, %v133
    %v719 = vmul.f32 %v134, %v134
    %v720 = vmul.f32 %v135, %v135
    %v721 = vmul.f32 %v136, %v136
    %v722 = vmul.f32 %v137, %v137
    %v723 = vmul.f32 %v138, %v138
    %v724 = vmul.f32 %v139, %v139
    %v725 = vmul.f32 %v140, %v140
    %v726 = vmul.f32 %v141, %v141
    %v727 = vmul.f32 %v142, %v142
    %v728 = vmul.f32 %v143, %v143
    %v729 = vmul.f32 %v144, %v144
    %v730 = vmul.f32 %v145, %v145
    %v731 = vmul.f32 %v146, %v146
    %v732 = vmul.f32 %v147, %v147
    %v733 = vmul.f32 %v148, %v148
    %v734 = vmul.f32 %v149, %v149
    %v735 = vmul.f32 %v150, %v150
    %v736 = vmul.f32 %v151, %v151
    %v737 = vmul.f32 %v152, %v152
    %v738 = vmul.f32 %v153, %v153
    %v739 = vmul.f32 %v154, %v154
    %v740 = vmul.f32 %v155, %v155
    %v741 = vmul.f32 %v156, %v156
    %v742 = vmul.f32 %v157, %v157
    %v743 = vmul.f32 %v158, %v158
    %v744 = vmul.f32 %v159, %v159
    %v745 = vmul.f32 %v160, %v160
    %v746 = vmul.f32 %v161, %v161
    %v747 = vmul.f32 %v162, %v162
    %v748 = vsel %vm205, %v716, 0.0
    %749 = vadd.xlane.f32.xlu0 %v748
    %v750 = vpop.xlane.xlu0 %749
    %v751 = vsel %vm205, %v717, 0.0
    %752 = vadd.xlane.f32.xlu0 %v751
    %v753 = vpop.xlane.xlu0 %752
    %v754 = vsel %vm205, %v718, 0.0
    %755 = vadd.xlane.f32.xlu0 %v754
    %v756 = vpop.xlane.xlu0 %755
    %v757 = vsel %vm205, %v719, 0.0
    %758 = vadd.xlane.f32.xlu0 %v757
    %v759 = vpop.xlane.xlu0 %758
    %v760 = vsel %vm205, %v720, 0.0
    %761 = vadd.xlane.f32.xlu0 %v760
    %v762 = vpop.xlane.xlu0 %761
    %v763 = vsel %vm205, %v721, 0.0
    %764 = vadd.xlane.f32.xlu0 %v763
    %v765 = vpop.xlane.xlu0 %764
    %v766 = vsel %vm205, %v722, 0.0
    %767 = vadd.xlane.f32.xlu0 %v766
    %v768 = vpop.xlane.xlu0 %767
    %v769 = vsel %vm205, %v723, 0.0
    %770 = vadd.xlane.f32.xlu0 %v769
    %v771 = vpop.xlane.xlu0 %770
    %v772 = vsel %vm205, %v724, 0.0
    %773 = vadd.xlane.f32.xlu0 %v772
    %v774 = vpop.xlane.xlu0 %773
    %v775 = vsel %vm205, %v725, 0.0
    %776 = vadd.xlane.f32.xlu0 %v775
    %v777 = vpop.xlane.xlu0 %776
    %v778 = vsel %vm205, %v726, 0.0
    %779 = vadd.xlane.f32.xlu0 %v778
    %v780 = vpop.xlane.xlu0 %779
    %v781 = vsel %vm205, %v727, 0.0
    %782 = vadd.xlane.f32.xlu0 %v781
    %v783 = vpop.xlane.xlu0 %782
    %v784 = vsel %vm205, %v728, 0.0
    %785 = vadd.xlane.f32.xlu0 %v784
    %v786 = vpop.xlane.xlu0 %785
    %v787 = vsel %vm205, %v729, 0.0
    %788 = vadd.xlane.f32.xlu0 %v787
    %v789 = vpop.xlane.xlu0 %788
    %v790 = vsel %vm205, %v730, 0.0
    %791 = vadd.xlane.f32.xlu0 %v790
    %v792 = vpop.xlane.xlu0 %791
    %v793 = vsel %vm205, %v731, 0.0
    %794 = vadd.xlane.f32.xlu0 %v793
    %v795 = vpop.xlane.xlu0 %794
    %v796 = vsel %vm205, %v732, 0.0
    %797 = vadd.xlane.f32.xlu0 %v796
    %v798 = vpop.xlane.xlu0 %797
    %v799 = vsel %vm205, %v733, 0.0
    %800 = vadd.xlane.f32.xlu0 %v799
    %v801 = vpop.xlane.xlu0 %800
    %v802 = vsel %vm205, %v734, 0.0
    %803 = vadd.xlane.f32.xlu0 %v802
    %v804 = vpop.xlane.xlu0 %803
    %v805 = vsel %vm205, %v735, 0.0
    %806 = vadd.xlane.f32.xlu0 %v805
    %v807 = vpop.xlane.xlu0 %806
    %v808 = vsel %vm205, %v736, 0.0
    %809 = vadd.xlane.f32.xlu0 %v808
    %v810 = vpop.xlane.xlu0 %809
    %v811 = vsel %vm205, %v737, 0.0
    %812 = vadd.xlane.f32.xlu0 %v811
    %v813 = vpop.xlane.xlu0 %812
    %v814 = vsel %vm205, %v738, 0.0
    %815 = vadd.xlane.f32.xlu0 %v814
    %v816 = vpop.xlane.xlu0 %815
    %v817 = vsel %vm205, %v739, 0.0
    %818 = vadd.xlane.f32.xlu0 %v817
    %v819 = vpop.xlane.xlu0 %818
    %v820 = vsel %vm205, %v740, 0.0
    %821 = vadd.xlane.f32.xlu0 %v820
    %v822 = vpop.xlane.xlu0 %821
    %v823 = vsel %vm205, %v741, 0.0
    %824 = vadd.xlane.f32.xlu0 %v823
    %v825 = vpop.xlane.xlu0 %824
    %v826 = vsel %vm205, %v742, 0.0
    %827 = vadd.xlane.f32.xlu0 %v826
    %v828 = vpop.xlane.xlu0 %827
    %v829 = vsel %vm205, %v743, 0.0
    %830 = vadd.xlane.f32.xlu0 %v829
    %v831 = vpop.xlane.xlu0 %830
    %v832 = vsel %vm205, %v744, 0.0
    %833 = vadd.xlane.f32.xlu0 %v832
    %v834 = vpop.xlane.xlu0 %833
    %v835 = vsel %vm205, %v745, 0.0
    %836 = vadd.xlane.f32.xlu0 %v835
    %v837 = vpop.xlane.xlu0 %836
    %v838 = vsel %vm205, %v746, 0.0
    %839 = vadd.xlane.f32.xlu0 %v838
    %v840 = vpop.xlane.xlu0 %839
    %v841 = vsel %vm205, %v747, 0.0
    %842 = vadd.xlane.f32.xlu0 %v841
    %v843 = vpop.xlane.xlu0 %842
    %v876 = vperm.slane %v750, %v104
    %v877 = vperm.slane %v753, %v637
    %v878 = vsel %vm639, %v877, %v876
    %v879 = vperm.slane %v756, %v641
    %v880 = vsel %vm643, %v879, %v878
    %v881 = vperm.slane %v759, %v645
    %v882 = vsel %vm647, %v881, %v880
    %v883 = vperm.slane %v762, %v104
    %v884 = vperm.slane %v765, %v637
    %v885 = vsel %vm639, %v884, %v883
    %v886 = vperm.slane %v768, %v641
    %v887 = vsel %vm643, %v886, %v885
    %v888 = vperm.slane %v771, %v645
    %v889 = vsel %vm647, %v888, %v887
    %v890 = vperm.slane %v774, %v104
    %v891 = vperm.slane %v777, %v637
    %v892 = vsel %vm639, %v891, %v890
    %v893 = vperm.slane %v780, %v641
    %v894 = vsel %vm643, %v893, %v892
    %v895 = vperm.slane %v783, %v645
    %v896 = vsel %vm647, %v895, %v894
    %v897 = vperm.slane %v786, %v104
    %v898 = vperm.slane %v789, %v637
    %v899 = vsel %vm639, %v898, %v897
    %v900 = vperm.slane %v792, %v641
    %v901 = vsel %vm643, %v900, %v899
    %v902 = vperm.slane %v795, %v645
    %v903 = vsel %vm647, %v902, %v901
    %v904 = vperm.slane %v798, %v104
    %v905 = vperm.slane %v801, %v637
    %v906 = vsel %vm639, %v905, %v904
    %v907 = vperm.slane %v804, %v641
    %v908 = vsel %vm643, %v907, %v906
    %v909 = vperm.slane %v807, %v645
    %v910 = vsel %vm647, %v909, %v908
    %v911 = vperm.slane %v810, %v104
    %v912 = vperm.slane %v813, %v637
    %v913 = vsel %vm639, %v912, %v911
    %v914 = vperm.slane %v816, %v641
    %v915 = vsel %vm643, %v914, %v913
    %v916 = vperm.slane %v819, %v645
    %v917 = vsel %vm647, %v916, %v915
    %v918 = vperm.slane %v822, %v104
    %v919 = vperm.slane %v825, %v637
    %v920 = vsel %vm639, %v919, %v918
    %v921 = vperm.slane %v828, %v641
    %v922 = vsel %vm643, %v921, %v920
    %v923 = vperm.slane %v831, %v645
    %v924 = vsel %vm647, %v923, %v922
    %v925 = vperm.slane %v834, %v104
    %v926 = vperm.slane %v837, %v637
    %v927 = vsel %vm639, %v926, %v925
    %v928 = vperm.slane %v840, %v641
    %v929 = vsel %vm643, %v928, %v927
    %v930 = vperm.slane %v843, %v645
    %v931 = vsel %vm647, %v930, %v929
    %v932 = vsel %vm698, %v889, %v882
    %v933 = vsel %vm700, %v896, %v932
    %v934 = vsel %vm702, %v903, %v933
    %v935 = vsel %vm704, %v910, %v934
    %v936 = vsel %vm706, %v917, %v935
    %v937 = vsel %vm708, %v924, %v936
    %v938 = vsel %vm710, %v931, %v937
    %v940 = vsel %vm205, %v938, 0.0
    %941 = vadd.xlane.f32.xlu0 %v940
    %v942 = vpop.xlane.xlu0 %941
    %v943 = vmul.f32 %v942, 2.0
    %v944 = vsub.f32 %v715, %v943
    %v945 = vadd.f32 %v944, 32.0
    %v946 = vmax.f32 %v945, 0.0
    %v947 = vrsqrt.pop %v946
    %v948 = vmul.f32 %v947, %v946
    %v949 = vmul.f32 %v948, %v947
    %v950 = vmul.f32 0.5, %v949
    %v951 = vsub.f32 1.5, %v950
    %v952 = vmul.f32 %v947, %v951
    %v953 = vmul.f32 %v946, %v952
    %vm954 = vcmp.eq.f32.partialorder %v946, inf
    %v955 = vsel %vm954, %v946, %v953
    %vm956 = vcmp.eq.f32.partialorder %v946, 0.0
    %v957 = vand.u32 %v946, 2147483648
    %v958 = vsel %vm956, %v957, %v955
    %v959 = vmul.f32 %v89, %v958
    %v960 = vsel %vm120, %v959, 0.0
    %961 = vadd.xlane.f32.xlu0 %v960
    %v962 = vpop.xlane.xlu0 %961
    %v963 = vrot.slane %v962, 4
    %v964 = vadd.f32 %v962, %v963
    %v965 = vrot.slane %v964, 2
    %v966 = vadd.f32 %v964, %v965
    %v967 = vrot.slane %v966, 1
    %v968 = vadd.f32 %v966, %v967
    %s969 = vtos %v968
    %v970 = vld [vmem:[#allocation2] sm:$0x1]
    %s971 = smul.f32 %s969, 0.001
    %s972 = sadd.f32 %s130, %s971
    %v973 = vstv %s972
    %v974 = vadd.f32 %v970, %v973
    %vm975 = vcmask 0
    %976 = vst.msk [vmem:[#allocation2] sm:$0x1] %vm975, %v974
    // Predicated region
    $region22: #{tpu_custom_call.1} parent=1 // pred_check
      %p977 = pneg %p73
    $region23: #{tpu_custom_call.1} parent=1 // pred_check_branch
      %979 = sbr.rel (%p977) target = $region25
    $region24: #{tpu_custom_call.1} parent=1 // pred_region
      %v980 = vld [vmem:[#allocation2] sm:$0x1]
      %v981 = vmul.f32 %v980, 0.125
      %982 = vst.msk [vmem:[#allocation6] sm:$0x1] %vm975, %v981
    $region25: #{tpu_custom_call.1} parent=1 // pred_fallthru
      _
    // Predicated region
    $region26: #{tpu_custom_call.1} parent=1 // pred_check
      _
    $region27: #{tpu_custom_call.1} parent=1 // pred_check_branch
      %984 = sbr.rel (0) target = $region29
    $region28: #{tpu_custom_call.1} parent=1 // pred_region
      %986 = vsyncadd [#allocation5], 0
      %s988 = sshll.u32 [#allocation6], 4
      %s989 = int_to_ptr.vmem [resolvable:$true] %s988
      %s990 = sshll.u32 %s3, 4
      %s991 = int_to_ptr.hbm [resolvable:$true] %s990
      %993 = dma.vmem_to_hbm [thread:$0]  %s989, 16, %s991, [#allocation5]
    $region29: #{tpu_custom_call.1} parent=1 // pred_fallthru
      _
    // Predicated region
    $region30: #{tpu_custom_call.1} parent=1 // pred_check
      _
    $region31: #{tpu_custom_call.1} parent=1 // pred_check_branch
      %995 = sbr.rel (0) target = $region33
    $region32: #{tpu_custom_call.1} parent=1 // pred_region
      %997 = dma.done [#allocation5], 16
    $region33: #{tpu_custom_call.1} parent=1 // pred_fallthru
      _
    %998 = vsyncpa [#allocation4], 1
    %999 = vsyncpa [#allocation5], 1

</llo_original>
